<compile_context>
chip_gen: v7x
topology: tpu7x:2x2x1
jax: 0.10.0
libtpu: 0.0.40
codegen_flags: <defaults>
</compile_context>

<pallas_src>
import jax
import jax.numpy as jnp
from jax.experimental import pallas as pl
from jax.experimental.pallas import tpu as pltpu

_NEG_LARGE = -1e30  # behaves like -inf for softmax, stays finite in f32/bf16


def _cross_entropy_kernel(logits_ref, labels_ref, out_ref, sum_sc, cnt_sc):
    # logits_ref: (T, Cp) input dtype, labels_ref: (T, 1) int32,
    # out_ref: (1, 1) f32, sum_sc / cnt_sc: (1, 1) f32 VMEM accumulators.
    pid = pl.program_id(0)

    @pl.when(pid == 0)
    def _init():
        sum_sc[...] = jnp.zeros_like(sum_sc)
        cnt_sc[...] = jnp.zeros_like(cnt_sc)

    x = logits_ref[...].astype(jnp.float32)            # (T, Cp)
    lbl = labels_ref[...]                               # (T, 1) int32
    t, cp = x.shape

    # rows with label < 0 are ignored (covers ignore_index=-100 and batch padding)
    valid = lbl >= 0                                     # (T, 1) bool

    # numerically-stable logsumexp per row (padded class lanes contribute ~0)
    m = jnp.max(x, axis=-1, keepdims=True)               # (T, 1)
    lse = jnp.log(jnp.sum(jnp.exp(x - m), axis=-1, keepdims=True)) + m

    # gather x[n, label[n]] with a single compare+select (no one-hot materialization)
    col = jax.lax.broadcasted_iota(jnp.int32, (t, cp), 1)
    picked = jnp.sum(jnp.where(col == lbl, x, 0.0), axis=-1, keepdims=True)  # (T, 1)

    per_example = jnp.where(valid, lse - picked, 0.0)     # (T, 1) = -log p[label]

    sum_sc[...] += jnp.sum(per_example, keepdims=True)
    cnt_sc[...] += jnp.sum(valid.astype(jnp.float32), keepdims=True)

    @pl.when(pid == pl.num_programs(0) - 1)
    def _finalize():
        out_ref[...] = sum_sc[...] / jnp.maximum(cnt_sc[...], 1.0)


def clip_filter_loss(logits, concepts_labels):
    """Pallas equivalent of ClipFilter.forward -> {'filter_loss': ...}.

    logits:          (N, C) float array  (CONCEPTS_PRED), f32 or bf16
    concepts_labels: (N,)   int array of class indices (CONCEPTS_LABELS);
                     labels < 0 (e.g. -100) are ignored, as in nn.CrossEntropyLoss.
    """
    n, c = logits.shape
    dtype = logits.dtype

    # ---- lane-dense class axis: pad C up to a multiple of 128 ----
    c_pad = ((c + 127) // 128) * 128
    if c_pad != c:
        logits = jnp.concatenate(
            [logits, jnp.full((n, c_pad - c), _NEG_LARGE, dtype=dtype)], axis=1)

    labels = concepts_labels.astype(jnp.int32).reshape(n, 1)

    # ---- choose the batch tile: keep double-buffered inputs well under the
    #      32 MiB scoped-VMEM budget (safe on v5e / v6e / v7x) ----
    itemsize = jnp.dtype(dtype).itemsize
    bytes_per_row = c_pad * itemsize + 4                   # logits row + label
    tile_n = (10 * 1024 * 1024) // bytes_per_row           # ~10 MiB per buffer copy
    tile_n = int(max(8, min(1024, (tile_n // 8) * 8)))     # multiple of 8 sublanes
    n_pad_min = ((n + 7) // 8) * 8
    tile_n = min(tile_n, n_pad_min)

    # ---- pad the batch to a multiple of tile_n; padded rows get label -1 ----
    n_pad = ((n + tile_n - 1) // tile_n) * tile_n
    if n_pad != n:
        logits = jnp.concatenate(
            [logits, jnp.full((n_pad - n, c_pad), _NEG_LARGE, dtype=dtype)], axis=0)
        labels = jnp.concatenate(
            [labels, jnp.full((n_pad - n, 1), -1, dtype=jnp.int32)], axis=0)

    grid = (n_pad // tile_n,)

    out = pl.pallas_call(
        _cross_entropy_kernel,
        out_shape=jax.ShapeDtypeStruct((1, 1), jnp.float32),
        grid=grid,
        in_specs=[
            pl.BlockSpec((tile_n, c_pad), lambda i: (i, 0)),
            pl.BlockSpec((tile_n, 1), lambda i: (i, 0)),
        ],
        out_specs=pl.BlockSpec((1, 1), lambda i: (0, 0)),
        scratch_shapes=[
            pltpu.VMEM((1, 1), jnp.float32),   # running loss sum
            pltpu.VMEM((1, 1), jnp.float32),   # running valid-row count
        ],
        compiler_params=pltpu.CompilerParams(
            dimension_semantics=("arbitrary",),     # accumulation axis
            vmem_limit_bytes=32 * 1024 * 1024,
        ),
    )(logits, labels)

    # TODO(synk): per-class `weight=` of nn.CrossEntropyLoss is not supported
    # (the module uses the default, unweighted criterion).
    return {"filter_loss": out[0, 0]}


def _reference_loss(logits, labels):
    # Pure-JAX nn.CrossEntropyLoss (mean reduction, ignore labels < 0).
    logp = jax.nn.log_softmax(logits.astype(jnp.float32), axis=-1)
    n = logits.shape[0]
    picked = logp[jnp.arange(n), jnp.maximum(labels, 0)]
    valid = labels >= 0
    return -jnp.sum(jnp.where(valid, picked, 0.0)) / jnp.maximum(
        jnp.sum(valid.astype(jnp.float32)), 1.0)


if __name__ == "__main__":
    key = jax.random.PRNGKey(0)

    # Case 1: shapes already aligned (batch=8, num_classes=32).
    k1, k2, k3, k4 = jax.random.split(key, 4)
    logits_a = jax.random.normal(k1, (8, 32), dtype=jnp.float32)
    labels_a = jax.random.randint(k2, (8,), 0, 32, dtype=jnp.int32)
    loss_a = jax.block_until_ready(clip_filter_loss(logits_a, labels_a)["filter_loss"])
    ref_a = _reference_loss(logits_a, labels_a)
    assert jnp.allclose(loss_a, ref_a, atol=1e-5, rtol=1e-5), (loss_a, ref_a)

    # Case 2: ragged shapes (batch=6, num_classes=37) -> exercises row/lane padding.
    logits_b = jax.random.normal(k3, (6, 37), dtype=jnp.float32)
    labels_b = jax.random.randint(k4, (6,), 0, 37, dtype=jnp.int32)
    loss_b = jax.block_until_ready(clip_filter_loss(logits_b, labels_b)["filter_loss"])
    ref_b = _reference_loss(logits_b, labels_b)
    assert jnp.allclose(loss_b, ref_b, atol=1e-5, rtol=1e-5), (loss_b, ref_b)

    print("KERNEL_OK")
</pallas_src>

<mosaic_0001>
module attributes {stable_mosaic.version = 11 : i64} {
  func.func @_cross_entropy_kernel(%arg0: i32, %arg1: memref<8x128xf32, #tpu.memory_space<vmem>>, %arg2: memref<8x1xi32, #tpu.memory_space<vmem>>, %arg3: memref<1x1xf32, #tpu.memory_space<vmem>>, %arg4: memref<1x1xf32, #tpu.memory_space<vmem>>, %arg5: memref<1x1xf32, #tpu.memory_space<vmem>>) attributes {dimension_semantics = [#tpu.dimension_semantics<arbitrary>], iteration_bounds = array<i64: 1>, scalar_prefetch = 0 : i64, scratch_operands = 2 : i64, tpu.core_type = #tpu.core_type<tc>, window_params = [{transform_indices = @transform_0, window_bounds = array<i64: 8, 128>}, {transform_indices = @transform_1, window_bounds = array<i64: 8, 1>}, {pipeline_mode = #tpu.pipeline_mode<synchronous>, transform_indices = @transform_2, window_bounds = array<i64: 1, 1>}]} {
    %c0_i32 = arith.constant 0 : i32
    %0 = arith.cmpi eq, %arg0, %c0_i32 : i32
    %1 = arith.extui %0 : i1 to i32
    %c0_i32_0 = arith.constant 0 : i32
    %2 = arith.cmpi ne, %1, %c0_i32_0 : i32
    scf.if %2 {
      %cst_21 = arith.constant 0.000000e+00 : f32
      %47 = vector.broadcast %cst_21 : f32 to vector<1x1xf32>
      %c0_22 = arith.constant 0 : index
      %c0_23 = arith.constant 0 : index
      %48 = vector.load %arg4[%c0_22, %c0_23] : memref<1x1xf32, #tpu.memory_space<vmem>>, vector<1x1xf32>
      tpu.vector_store %arg4[%c0_22, %c0_23], %47 {strides = array<i32>} : memref<1x1xf32, #tpu.memory_space<vmem>>, vector<1x1xf32>,
      %cst_24 = arith.constant 0.000000e+00 : f32
      %49 = vector.broadcast %cst_24 : f32 to vector<1x1xf32>
      %c0_25 = arith.constant 0 : index
      %c0_26 = arith.constant 0 : index
      %50 = vector.load %arg5[%c0_25, %c0_26] : memref<1x1xf32, #tpu.memory_space<vmem>>, vector<1x1xf32>
      tpu.vector_store %arg5[%c0_25, %c0_26], %49 {strides = array<i32>} : memref<1x1xf32, #tpu.memory_space<vmem>>, vector<1x1xf32>,
    } else {
    }
    %c0 = arith.constant 0 : index
    %c0_1 = arith.constant 0 : index
    %3 = vector.load %arg1[%c0, %c0_1] : memref<8x128xf32, #tpu.memory_space<vmem>>, vector<8x128xf32>
    %c0_2 = arith.constant 0 : index
    %c0_3 = arith.constant 0 : index
    %4 = vector.load %arg2[%c0_2, %c0_3] : memref<8x1xi32, #tpu.memory_space<vmem>>, vector<8x1xi32>
    %c0_i32_4 = arith.constant 0 : i32
    %5 = vector.broadcast %c0_i32_4 : i32 to vector<8x1xi32>
    %6 = arith.cmpi sge, %4, %5 : vector<8x1xi32>
    %cst = arith.constant dense<0xFF800000> : vector<8xf32>
    %7 = vector.multi_reduction <maximumf>, %3, %cst [1] : vector<8x128xf32> to vector<8xf32>
    %8 = vector.shape_cast %7 : vector<8xf32> to vector<8x1xf32>
    %9 = vector.broadcast %8 : vector<8x1xf32> to vector<8x128xf32>
    %10 = arith.subf %3, %9 : vector<8x128xf32>
    %11 = math.exp %10 : vector<8x128xf32>
    %cst_5 = arith.constant dense<0.000000e+00> : vector<8xf32>
    %12 = vector.multi_reduction <add>, %11, %cst_5 [1] : vector<8x128xf32> to vector<8xf32>
    %13 = vector.shape_cast %12 : vector<8xf32> to vector<8x1xf32>
    %14 = math.log %13 : vector<8x1xf32>
    %15 = arith.addf %14, %8 : vector<8x1xf32>
    %16 = tpu.iota {dimensions = array<i32: 1>} : vector<8x128xi32>
    %17 = vector.broadcast %4 : vector<8x1xi32> to vector<8x128xi32>
    %18 = arith.cmpi eq, %16, %17 : vector<8x128xi32>
    %cst_6 = arith.constant 0.000000e+00 : f32
    %19 = vector.broadcast %cst_6 : f32 to vector<8x128xf32>
    %20 = arith.select %18, %3, %19 : vector<8x128xi1>, vector<8x128xf32>
    %cst_7 = arith.constant dense<0.000000e+00> : vector<8xf32>
    %21 = vector.multi_reduction <add>, %20, %cst_7 [1] : vector<8x128xf32> to vector<8xf32>
    %22 = vector.shape_cast %21 : vector<8xf32> to vector<8x1xf32>
    %23 = arith.subf %15, %22 : vector<8x1xf32>
    %cst_8 = arith.constant 0.000000e+00 : f32
    %24 = vector.broadcast %cst_8 : f32 to vector<8x1xf32>
    %25 = arith.select %6, %23, %24 : vector<8x1xi1>, vector<8x1xf32>
    %c0_9 = arith.constant 0 : index
    %c0_10 = arith.constant 0 : index
    %26 = vector.load %arg4[%c0_9, %c0_10] : memref<1x1xf32, #tpu.memory_space<vmem>>, vector<1x1xf32>
    %27 = vector.shape_cast %25 : vector<8x1xf32> to vector<1x8x1xf32>
    %cst_11 = arith.constant dense<0.000000e+00> : vector<1xf32>
    %28 = vector.multi_reduction <add>, %27, %cst_11 [1, 2] : vector<1x8x1xf32> to vector<1xf32>
    %29 = vector.shape_cast %28 : vector<1xf32> to vector<1x1x1xf32>
    %30 = vector.extract %29[0, 0, 0] : f32 from vector<1x1x1xf32>
    %31 = vector.broadcast %30 : f32 to vector<1x1xf32>
    %32 = arith.addf %26, %31 : vector<1x1xf32>
    %c0_12 = arith.constant 0 : index
    %c0_13 = arith.constant 0 : index
    %33 = vector.load %arg4[%c0_12, %c0_13] : memref<1x1xf32, #tpu.memory_space<vmem>>, vector<1x1xf32>
    tpu.vector_store %arg4[%c0_12, %c0_13], %32 {strides = array<i32>} : memref<1x1xf32, #tpu.memory_space<vmem>>, vector<1x1xf32>,
    %c0_14 = arith.constant 0 : index
    %c0_15 = arith.constant 0 : index
    %34 = vector.load %arg5[%c0_14, %c0_15] : memref<1x1xf32, #tpu.memory_space<vmem>>, vector<1x1xf32>
    %35 = arith.extui %6 : vector<8x1xi1> to vector<8x1xi32>
    %36 = arith.sitofp %35 : vector<8x1xi32> to vector<8x1xf32>
    %37 = vector.shape_cast %36 : vector<8x1xf32> to vector<1x8x1xf32>
    %cst_16 = arith.constant dense<0.000000e+00> : vector<1xf32>
    %38 = vector.multi_reduction <add>, %37, %cst_16 [1, 2] : vector<1x8x1xf32> to vector<1xf32>
    %39 = vector.shape_cast %38 : vector<1xf32> to vector<1x1x1xf32>
    %40 = vector.extract %39[0, 0, 0] : f32 from vector<1x1x1xf32>
    %41 = vector.broadcast %40 : f32 to vector<1x1xf32>
    %42 = arith.addf %34, %41 : vector<1x1xf32>
    %c0_17 = arith.constant 0 : index
    %c0_18 = arith.constant 0 : index
    %43 = vector.load %arg5[%c0_17, %c0_18] : memref<1x1xf32, #tpu.memory_space<vmem>>, vector<1x1xf32>
    tpu.vector_store %arg5[%c0_17, %c0_18], %42 {strides = array<i32>} : memref<1x1xf32, #tpu.memory_space<vmem>>, vector<1x1xf32>,
    %c0_i32_19 = arith.constant 0 : i32
    %44 = arith.cmpi eq, %arg0, %c0_i32_19 : i32
    %45 = arith.extui %44 : i1 to i32
    %c0_i32_20 = arith.constant 0 : i32
    %46 = arith.cmpi ne, %45, %c0_i32_20 : i32
    scf.if %46 {
      %c0_21 = arith.constant 0 : index
      %c0_22 = arith.constant 0 : index
      %47 = vector.load %arg4[%c0_21, %c0_22] : memref<1x1xf32, #tpu.memory_space<vmem>>, vector<1x1xf32>
      %c0_23 = arith.constant 0 : index
      %c0_24 = arith.constant 0 : index
      %48 = vector.load %arg5[%c0_23, %c0_24] : memref<1x1xf32, #tpu.memory_space<vmem>>, vector<1x1xf32>
      %cst_25 = arith.constant 1.000000e+00 : f32
      %49 = vector.broadcast %cst_25 : f32 to vector<1x1xf32>
      %50 = arith.maximumf %48, %49 : vector<1x1xf32>
      %51 = arith.divf %47, %50 : vector<1x1xf32>
      %c0_26 = arith.constant 0 : index
      %c0_27 = arith.constant 0 : index
      %52 = vector.load %arg3[%c0_26, %c0_27] : memref<1x1xf32, #tpu.memory_space<vmem>>, vector<1x1xf32>
      tpu.vector_store %arg3[%c0_26, %c0_27], %51 {strides = array<i32>} : memref<1x1xf32, #tpu.memory_space<vmem>>, vector<1x1xf32>,
    } else {
    }
    return
  }
  func.func @transform_0(%arg0: i32) -> (i32, i32) {
    %c0_i32 = arith.constant 0 : i32
    %c0_i32_0 = arith.constant 0 : i32
    return %arg0, %c0_i32 : i32, i32
  }
  func.func @transform_1(%arg0: i32) -> (i32, i32) {
    %c0_i32 = arith.constant 0 : i32
    %c0_i32_0 = arith.constant 0 : i32
    return %arg0, %c0_i32 : i32, i32
  }
  func.func @transform_2(%arg0: i32) -> (i32, i32) {
    %c0_i32 = arith.constant 0 : i32
    %c0_i32_0 = arith.constant 0 : i32
    %c0_i32_1 = arith.constant 0 : i32
    return %c0_i32, %c0_i32_0 : i32, i32
  }
}

</mosaic_0001>

<llo_original>
// kernel: tpu_custom_call.1
$region0: #{tpu_custom_call.1}
  #allocation0 [shape = 'u32[]', space=smem, size = 0x4, offset = 0x4, fixed_abs, tag = 'smem constant byte address 0x4 - core index']
  #allocation1 [shape = 'u32[144,128]{1,0:T(1,128)}', space=vmem, size = 0x12000, scoped, tag = 'internal scratch']
  #allocation2 [shape = 'f32[1,1]{1,0:T(1,128)}', space=vmem, size = 0x200, scoped, tag = 'scratch operand']
  #allocation3 [shape = 'f32[1,1]{1,0:T(1,128)}', space=vmem, size = 0x200, scoped, tag = 'scratch operand']
  %s0 = inlined_call_operand.vmem [shape: f32[8,128], index: 0, kind: input, shape index: {}]
  %s1 = inlined_call_operand.vmem [shape: s32[8,1], index: 1, kind: input, shape index: {}]
  %s2 = inlined_call_operand.hbm [shape: f32[1,1], index: 2, kind: output, shape index: {}]
  %s3 = sld [smem:[#allocation0]]
  $region26: #{tpu_custom_call.1} parent=0
    _
  %s5 = ssub.s32 1, %s3
  %s6 = scalar_select 0, %s5, %s3
  $region1: #{tpu_custom_call.1} parent=0
    #allocation4 [shape = 'u8[512]{0}', space=vmem, size = 0x400, scoped, tag = 'output window, operand 0, single buffered']
    #allocation5 [shape = 's32[1]{0}', space=sflag, size = 0x4, scoped, tag = 'scoped memory for tpu_custom_call.1']
    %7 = vsyncpa [#allocation5], 0
    // Predicated region
    $region2: #{tpu_custom_call.1} parent=1 // pred_check
      _
    $region3: #{tpu_custom_call.1} parent=1 // pred_check_branch
      %9 = sbr.rel (0) target = $region5
    $region4: #{tpu_custom_call.1} parent=1 // pred_region
      _
    $region5: #{tpu_custom_call.1} parent=1 // pred_fallthru
      _
    // Predicated region
    $region6: #{tpu_custom_call.1} parent=1 // pred_check
      _
    $region7: #{tpu_custom_call.1} parent=1 // pred_check_branch
      %11 = sbr.rel (0) target = $region9
    $region8: #{tpu_custom_call.1} parent=1 // pred_region
      _
    $region9: #{tpu_custom_call.1} parent=1 // pred_fallthru
      _
    %p12 = scmp.eq.s32.totalorder 0, 0
    // Predicated region
    $region10: #{tpu_custom_call.1} parent=1 // pred_check
      %p13 = pneg %p12
    $region11: #{tpu_custom_call.1} parent=1 // pred_check_branch
      %15 = sbr.rel (%p13) target = $region13
    $region12: #{tpu_custom_call.1} parent=1 // pred_region
      %vm16 = vcmask 0
      %17 = vst.msk [vmem:[#allocation2] sm:$0x1] %vm16, 0.0
      %18 = vst.msk [vmem:[#allocation3] sm:$0x1] %vm16, 0.0
    $region13: #{tpu_custom_call.1} parent=1 // pred_fallthru
      _
    %v19 = vld [vmem:[%s0] sm:$0xff]
    %v20 = vld [vmem:[%s1] sm:$0xff]
    %vm21 = vcmp.ge.s32.totalorder %v20, 0
    %22 = vmax.xlane.f32.xlu0 %v19
    %v23 = vpop.xlane.xlu0 %22
    %v24 = vsub.f32 %v19, %v23
    %v25 = vmul.f32 %v24, 1.442695
    %v26 = vpow.pop %v25
    %27 = vadd.xlane.f32.xlu0 %v26
    %v28 = vpop.xlane.xlu0 %27
    %v29 = vlog2.pop %v28
    %v30 = vmul.f32 %v29, 0.6931472
    %v31 = vadd.f32 %v30, %v23
    %v32 = vlaneseq
    %v33 = vand.u32 %v32, 127
    %34 = vset.pattern.permute.xlu0 0
    %35 = vperm.xlu0 %34, %v20
    %v36 = vpop.permute.xlu0 %35
    %vm37 = vcmp.eq.s32.totalorder %v33, %v36
    %v38 = vsel %vm37, %v19, 0.0
    %39 = vadd.xlane.f32.xlu0 %v38
    %v40 = vpop.xlane.xlu0 %39
    %v41 = vsub.f32 %v31, %v40
    %v42 = vsel %vm21, %v41, 0.0
    %v43 = vld [vmem:[#allocation2] sm:$0x1]
    %vm44 = vcmask 7168
    %v45 = vsel %vm44, %v42, 0.0
    %46 = vadd.xlane.f32.xlu0 %v45
    %v47 = vpop.xlane.xlu0 %46
    %v48 = vrot.slane %v47, 4
    %v49 = vadd.f32 %v47, %v48
    %v50 = vrot.slane %v49, 2
    %v51 = vadd.f32 %v49, %v50
    %v52 = vrot.slane %v51, 1
    %v53 = vadd.f32 %v51, %v52
    %s54 = vtos %v53
    %v55 = vstv %s54
    %v56 = vadd.f32 %v43, %v55
    %vm57 = vcmask 0
    %58 = vst.msk [vmem:[#allocation2] sm:$0x1] %vm57, %v56
    %v59 = vld [vmem:[#allocation3] sm:$0x1]
    %v60 = vsel %vm21, 1, 0
    %v61 = vcvt.s32.f32 %v60
    %v62 = vsel %vm44, %v61, 0.0
    %63 = vadd.xlane.f32.xlu0 %v62
    %v64 = vpop.xlane.xlu0 %63
    %v65 = vrot.slane %v64, 4
    %v66 = vadd.f32 %v64, %v65
    %v67 = vrot.slane %v66, 2
    %v68 = vadd.f32 %v66, %v67
    %v69 = vrot.slane %v68, 1
    %v70 = vadd.f32 %v68, %v69
    %s71 = vtos %v70
    %v72 = vstv %s71
    %v73 = vadd.f32 %v59, %v72
    %74 = vst.msk [vmem:[#allocation3] sm:$0x1] %vm57, %v73
    // Predicated region
    $region14: #{tpu_custom_call.1} parent=1 // pred_check
      %p75 = pneg %p12
    $region15: #{tpu_custom_call.1} parent=1 // pred_check_branch
      %77 = sbr.rel (%p75) target = $region17
    $region16: #{tpu_custom_call.1} parent=1 // pred_region
      %v78 = vld [vmem:[#allocation2] sm:$0x1]
      %v79 = vld [vmem:[#allocation3] sm:$0x1]
      %v80 = vmax.f32 %v79, 1.0
      %v81 = vrcp.pop %v80
      %v82 = vmul.f32 %v78, %v81
      %83 = vst.msk [vmem:[#allocation4] sm:$0x1] %vm57, %v82
    $region17: #{tpu_custom_call.1} parent=1 // pred_fallthru
      _
    // Predicated region
    $region18: #{tpu_custom_call.1} parent=1 // pred_check
      _
    $region19: #{tpu_custom_call.1} parent=1 // pred_check_branch
      %85 = sbr.rel (0) target = $region21
    $region20: #{tpu_custom_call.1} parent=1 // pred_region
      %s87 = ssub.s32 16, 16
      %88 = vsyncadd [#allocation5], %s87
      %s90 = sshll.u32 [#allocation4], 4
      %s91 = int_to_ptr.vmem [resolvable:$true] %s90
      %93 = dma.vmem_to_hbm [thread:$0]  %s91, 16, %s2, [#allocation5]
    $region21: #{tpu_custom_call.1} parent=1 // pred_fallthru
      _
    // Predicated region
    $region22: #{tpu_custom_call.1} parent=1 // pred_check
      _
    $region23: #{tpu_custom_call.1} parent=1 // pred_check_branch
      %95 = sbr.rel (0) target = $region25
    $region24: #{tpu_custom_call.1} parent=1 // pred_region
      %96 = dma.done [#allocation5], 16
    $region25: #{tpu_custom_call.1} parent=1 // pred_fallthru
      _
    %97 = vsyncpa [#allocation5], 1

</llo_original>
